<compile_context>
chip_gen: v7x
topology: tpu7x:2x2x1
jax: 0.10.0
libtpu: 0.0.40
codegen_flags: <defaults>
</compile_context>

<pallas_src>
import jax
import jax.numpy as jnp
from jax.experimental import pallas as pl
from jax.experimental.pallas import tpu as pltpu


def _downmix_kernel(patch_ref, w_ref, bias_ref, alpha_ref, xdeep_ref, o_ref):
    # patch_ref: (K, TM)   transposed im2col patches (K=9C on sublanes, TM on lanes)
    # w_ref:     (CD, K)   conv weight with beta folded in (resident)
    # bias_ref:  (CD, 1)   conv bias * beta
    # alpha_ref: (CD, 1)   per-channel PReLU slope
    # xdeep_ref: (CD, TM)  residual-style second input (native NCHW layout)
    # o_ref:     (CD, TM)  lane-dense output tile (TM is a multiple of 128)
    y = jnp.dot(w_ref[...], patch_ref[...], preferred_element_type=jnp.float32)
    y = y + bias_ref[...] + xdeep_ref[...]
    a = alpha_ref[...]
    o_ref[...] = jnp.where(y >= 0.0, y, a * y)  # per-channel PReLU


def _round_up(x, m):
    return (x + m - 1) // m * m


def downmix_forward(x, x_deep, w, b, beta, alpha, *, tile_m=1024):
    """x: (N, C, H, W) f32; x_deep: (N, CD, OH, OW) f32.
    w: (CD, C, 3, 3), b: (CD,), beta: (1, CD, 1, 1), alpha: (CD,)."""
    N, C, H, W = x.shape
    CD = w.shape[0]
    OH = (H + 2 - 3) // 2 + 1
    OW = (W + 2 - 3) // 2 + 1
    assert x_deep.shape == (N, CD, OH, OW)

    K = 9 * C
    M = OH * OW  # output pixels per image

    # ---- glue: reflect pad + transposed im2col, all in NCHW (no transposes) ----
    xpad = jnp.pad(x, ((0, 0), (0, 0), (1, 1), (1, 1)), mode="reflect")

    # taps ordered (ky, kx); stacked after the channel axis so the K ordering is
    # (c, ky, kx), matching w.reshape(CD, C*3*3).
    taps = [xpad[:, :, ky:ky + 2 * OH:2, kx:kx + 2 * OW:2]
            for ky in range(3) for kx in range(3)]            # each (N, C, OH, OW)
    patches_t = jnp.stack(taps, axis=2).reshape(N, K, M).astype(jnp.float32)

    xdeep_flat = x_deep.reshape(N, CD, M).astype(jnp.float32)

    # fold beta into weight + bias (parameter-sized, done once, f32)
    beta_col = beta.reshape(CD, 1).astype(jnp.float32)
    w_eff = w.reshape(CD, K).astype(jnp.float32) * beta_col           # (CD, K)
    bias_eff = b.reshape(CD, 1).astype(jnp.float32) * beta_col        # (CD, 1)
    alpha_col = alpha.reshape(CD, 1).astype(jnp.float32)              # (CD, 1)

    # ---- tiling: pixel dim on lanes, tiles are multiples of 128 ----
    tile_m_eff = _round_up(min(tile_m, _round_up(M, 128)), 128)
    M_pad = _round_up(M, tile_m_eff)
    if M_pad != M:
        patches_t = jnp.pad(patches_t, ((0, 0), (0, 0), (0, M_pad - M)))
        xdeep_flat = jnp.pad(xdeep_flat, ((0, 0), (0, 0), (0, M_pad - M)))

    grid = (N, M_pad // tile_m_eff)

    cost = pl.CostEstimate(
        flops=2 * N * M * K * CD,
        transcendentals=0,
        bytes_accessed=4 * (N * K * M_pad + 2 * N * CD * M_pad + K * CD + 3 * CD),
    )

    out_flat = pl.pallas_call(
        _downmix_kernel,
        out_shape=jax.ShapeDtypeStruct((N, CD, M_pad), jnp.float32),
        grid_spec=pltpu.PrefetchScalarGridSpec(
            num_scalar_prefetch=0,
            grid=grid,
            in_specs=[
                # transposed im2col patches: (K, TILE_M) per (batch, M-tile)
                pl.BlockSpec((None, K, tile_m_eff), lambda n, j: (n, 0, j)),
                pl.BlockSpec((CD, K), lambda n, j: (0, 0)),       # weight (resident)
                pl.BlockSpec((CD, 1), lambda n, j: (0, 0)),       # bias * beta
                pl.BlockSpec((CD, 1), lambda n, j: (0, 0)),       # prelu alpha
                pl.BlockSpec((None, CD, tile_m_eff), lambda n, j: (n, 0, j)),  # x_deep
            ],
            out_specs=pl.BlockSpec((None, CD, tile_m_eff), lambda n, j: (n, 0, j)),
        ),
        compiler_params=pltpu.CompilerParams(
            dimension_semantics=("parallel", "parallel")),
        cost_estimate=cost,
    )(patches_t, w_eff, bias_eff, alpha_col, xdeep_flat)

    return out_flat[:, :, :M].reshape(N, CD, OH, OW)


def _reference_forward(x, x_deep, w, b, beta, alpha):
    xpad = jnp.pad(x, ((0, 0), (0, 0), (1, 1), (1, 1)), mode="reflect")
    y = jax.lax.conv_general_dilated(
        xpad, w, window_strides=(2, 2), padding="VALID",
        dimension_numbers=("NCHW", "OIHW", "NCHW"))
    y = y + b[None, :, None, None]
    y = y * beta + x_deep
    return jnp.where(y >= 0.0, y, alpha[None, :, None, None] * y)


if __name__ == "__main__":
    key = jax.random.PRNGKey(0)
    kx, kd, kw, kb, kbeta = jax.random.split(key, 5)

    N, C, CD, H, W = 2, 4, 8, 16, 16
    OH, OW = H // 2, W // 2

    x = jax.random.normal(kx, (N, C, H, W), dtype=jnp.float32)
    x_deep = jax.random.normal(kd, (N, CD, OH, OW), dtype=jnp.float32)

    # module parameters: Conv2d(c, cd, 3, bias=True), beta (init ones, perturbed
    # here to exercise the beta fold), PReLU(cd, 0.2)
    w = 0.1 * jax.random.normal(kw, (CD, C, 3, 3), dtype=jnp.float32)
    b = 0.05 * jax.random.normal(kb, (CD,), dtype=jnp.float32)
    beta = 1.0 + 0.1 * jax.random.normal(kbeta, (1, CD, 1, 1), dtype=jnp.float32)
    alpha = jnp.full((CD,), 0.2, dtype=jnp.float32)

    out = downmix_forward(x, x_deep, w, b, beta, alpha)
    out = jax.block_until_ready(out)

    ref = _reference_forward(x, x_deep, w, b, beta, alpha)
    assert out.shape == (N, CD, OH, OW)
    assert jnp.allclose(out, ref, rtol=1e-5, atol=1e-5), "mismatch vs reference"

    print("KERNEL_OK")
</pallas_src>

<mosaic_0001>
module attributes {stable_mosaic.version = 11 : i64} {
  func.func @_downmix_kernel(%arg0: i32, %arg1: i32, %arg2: memref<1x36x128xf32, #tpu.memory_space<vmem>>, %arg3: memref<8x36xf32, #tpu.memory_space<vmem>>, %arg4: memref<8x1xf32, #tpu.memory_space<vmem>>, %arg5: memref<8x1xf32, #tpu.memory_space<vmem>>, %arg6: memref<1x8x128xf32, #tpu.memory_space<vmem>>, %arg7: memref<1x8x128xf32, #tpu.memory_space<vmem>>) attributes {dimension_semantics = [#tpu.dimension_semantics<parallel>, #tpu.dimension_semantics<parallel>], iteration_bounds = array<i64: 2, 1>, scalar_prefetch = 0 : i64, scratch_operands = 0 : i64, tpu.core_type = #tpu.core_type<tc>, window_params = [{transform_indices = @transform_0, window_bounds = array<i64: 1, 36, 128>}, {pipeline_mode = #tpu.pipeline_mode<synchronous>, transform_indices = @transform_1, window_bounds = array<i64: 8, 36>}, {pipeline_mode = #tpu.pipeline_mode<synchronous>, transform_indices = @transform_2, window_bounds = array<i64: 8, 1>}, {pipeline_mode = #tpu.pipeline_mode<synchronous>, transform_indices = @transform_3, window_bounds = array<i64: 8, 1>}, {transform_indices = @transform_4, window_bounds = array<i64: 1, 8, 128>}, {transform_indices = @transform_5, window_bounds = array<i64: 1, 8, 128>}]} {
    %c0 = arith.constant 0 : index
    %c0_0 = arith.constant 0 : index
    %0 = vector.load %arg3[%c0, %c0_0] : memref<8x36xf32, #tpu.memory_space<vmem>>, vector<8x36xf32>
    %c0_1 = arith.constant 0 : index
    %c0_2 = arith.constant 0 : index
    %c0_3 = arith.constant 0 : index
    %1 = vector.load %arg2[%c0_1, %c0_2, %c0_3] : memref<1x36x128xf32, #tpu.memory_space<vmem>>, vector<1x36x128xf32>
    %2 = vector.shape_cast %1 : vector<1x36x128xf32> to vector<36x128xf32>
    %cst = arith.constant dense<0.000000e+00> : vector<8x128xf32>
    %3 = tpu.matmul %0, %2, %cst {dimension_numbers = #tpu.dot_dimension_numbers<[1], [0], [0], [1], [0, 0, 1, 1], [], []>} : vector<8x36xf32>, vector<36x128xf32>, vector<8x128xf32> -> vector<8x128xf32>
    %c0_4 = arith.constant 0 : index
    %c0_5 = arith.constant 0 : index
    %4 = vector.load %arg4[%c0_4, %c0_5] : memref<8x1xf32, #tpu.memory_space<vmem>>, vector<8x1xf32>
    %5 = vector.broadcast %4 : vector<8x1xf32> to vector<8x128xf32>
    %6 = arith.addf %3, %5 : vector<8x128xf32>
    %c0_6 = arith.constant 0 : index
    %c0_7 = arith.constant 0 : index
    %c0_8 = arith.constant 0 : index
    %7 = vector.load %arg6[%c0_6, %c0_7, %c0_8] : memref<1x8x128xf32, #tpu.memory_space<vmem>>, vector<1x8x128xf32>
    %8 = vector.shape_cast %7 : vector<1x8x128xf32> to vector<8x128xf32>
    %9 = arith.addf %6, %8 : vector<8x128xf32>
    %c0_9 = arith.constant 0 : index
    %c0_10 = arith.constant 0 : index
    %10 = vector.load %arg5[%c0_9, %c0_10] : memref<8x1xf32, #tpu.memory_space<vmem>>, vector<8x1xf32>
    %cst_11 = arith.constant 0.000000e+00 : f32
    %11 = vector.broadcast %cst_11 : f32 to vector<8x128xf32>
    %12 = arith.cmpf oge, %9, %11 : vector<8x128xf32>
    %13 = vector.broadcast %10 : vector<8x1xf32> to vector<8x128xf32>
    %14 = arith.mulf %13, %9 : vector<8x128xf32>
    %15 = arith.select %12, %9, %14 : vector<8x128xi1>, vector<8x128xf32>
    %c0_12 = arith.constant 0 : index
    %c0_13 = arith.constant 0 : index
    %c0_14 = arith.constant 0 : index
    %16 = vector.load %arg7[%c0_12, %c0_13, %c0_14] : memref<1x8x128xf32, #tpu.memory_space<vmem>>, vector<1x8x128xf32>
    %17 = vector.shape_cast %16 : vector<1x8x128xf32> to vector<8x128xf32>
    %18 = vector.shape_cast %15 : vector<8x128xf32> to vector<1x8x128xf32>
    tpu.vector_store %arg7[%c0_12, %c0_13, %c0_14], %18 {strides = array<i32>} : memref<1x8x128xf32, #tpu.memory_space<vmem>>, vector<1x8x128xf32>,
    return
  }
  func.func @transform_0(%arg0: i32, %arg1: i32) -> (i32, i32, i32) {
    %c0_i32 = arith.constant 0 : i32
    %c0_i32_0 = arith.constant 0 : i32
    return %arg0, %c0_i32, %arg1 : i32, i32, i32
  }
  func.func @transform_1(%arg0: i32, %arg1: i32) -> (i32, i32) {
    %c0_i32 = arith.constant 0 : i32
    %c0_i32_0 = arith.constant 0 : i32
    %c0_i32_1 = arith.constant 0 : i32
    return %c0_i32, %c0_i32_0 : i32, i32
  }
  func.func @transform_2(%arg0: i32, %arg1: i32) -> (i32, i32) {
    %c0_i32 = arith.constant 0 : i32
    %c0_i32_0 = arith.constant 0 : i32
    %c0_i32_1 = arith.constant 0 : i32
    return %c0_i32, %c0_i32_0 : i32, i32
  }
  func.func @transform_3(%arg0: i32, %arg1: i32) -> (i32, i32) {
    %c0_i32 = arith.constant 0 : i32
    %c0_i32_0 = arith.constant 0 : i32
    %c0_i32_1 = arith.constant 0 : i32
    return %c0_i32, %c0_i32_0 : i32, i32
  }
  func.func @transform_4(%arg0: i32, %arg1: i32) -> (i32, i32, i32) {
    %c0_i32 = arith.constant 0 : i32
    %c0_i32_0 = arith.constant 0 : i32
    return %arg0, %c0_i32, %arg1 : i32, i32, i32
  }
  func.func @transform_5(%arg0: i32, %arg1: i32) -> (i32, i32, i32) {
    %c0_i32 = arith.constant 0 : i32
    %c0_i32_0 = arith.constant 0 : i32
    return %arg0, %c0_i32, %arg1 : i32, i32, i32
  }
}

</mosaic_0001>

<llo_original>
// kernel: tpu_custom_call.1
$region0: #{tpu_custom_call.1}
  #allocation0 [shape = 'u32[]', space=smem, size = 0x4, offset = 0x4, fixed_abs, tag = 'smem constant byte address 0x4 - core index']
  #allocation1 [shape = 'u32[144,128]{1,0:T(1,128)}', space=vmem, size = 0x12000, scoped, tag = 'internal scratch']
  %s0 = inlined_call_operand.vmem [shape: f32[2,36,128], index: 0, kind: input, shape index: {}]
  %s1 = inlined_call_operand.vmem [shape: f32[8,36], index: 1, kind: input, shape index: {}]
  %s2 = inlined_call_operand.vmem [shape: f32[8,1], index: 2, kind: input, shape index: {}]
  %s3 = inlined_call_operand.vmem [shape: f32[8,1], index: 3, kind: input, shape index: {}]
  %s4 = inlined_call_operand.vmem [shape: f32[2,8,128], index: 4, kind: input, shape index: {}]
  %s5 = inlined_call_operand.hbm [shape: f32[2,8,128], index: 5, kind: output, shape index: {}]
  %s6 = sld [smem:[#allocation0]]
  $region53: #{tpu_custom_call.1} parent=0
    _
  %s8 = ssub.s32 1, %s6
  %s9 = scalar_select 0, %s8, %s6
  $region1: #{tpu_custom_call.1} parent=0
    #allocation2 [shape = 'u8[8192]{0}', space=vmem, size = 0x2000, scoped, tag = 'output window, operand 0']
    #allocation3 [shape = 's32[2]{0}', space=sflag, size = 0x8, scoped, tag = 'scoped memory for tpu_custom_call.1']
    %10 = vsyncpa [#allocation3], 0
    %s11 = scalar_lea.sflag [#allocation3], 1
    %12 = vsyncpa %s11, 0
    loop: start=0, step=1, limit=4
    $region2: #{tpu_custom_call.1} parent=1 // loop_pre_header
      _
    $region3: #{tpu_custom_call.1} parent=1 // loop_header
      %s14 = sphi 0, %s18
      %p15 = scmp.ge.s32.totalorder %s14, 4
      %s21 = sphi 0, %s33
      %s22 = sphi 0, %s29
      %s23 = sphi 0, %s21
      %s24 = sphi 0, %s22
      %s25 = sphi 0, %s23
      %s26 = sphi 0, %s24
      %s38 = sphi 0, %s40
      %s41 = sphi 0, %s38
      %s42 = sphi 0, %s41
      %s58 = sphi 0, %s42
      %s62 = sphi 0, %s62
      %s64 = sphi 0, %s62
      %s65 = sphi 0, %s64
      %s79 = sphi 0, %s65
      %s83 = sphi 0, %s83
      %s85 = sphi 0, %s83
      %s86 = sphi 0, %s85
      %s100 = sphi 0, %s86
      %s104 = sphi 0, %s104
      %s106 = sphi 0, %s104
      %s107 = sphi 0, %s106
      %s121 = sphi 0, %s107
      %s129 = sphi 0, %s131
      %s132 = sphi 0, %s129
      %s133 = sphi 0, %s132
      %s149 = sphi 0, %s133
      %s157 = sphi 0, %s159
      %s160 = sphi 0, %s157
      %s161 = sphi 0, %s160
      %s177 = sphi 0, %s161
    $region4: #{tpu_custom_call.1} parent=1 // loop_header_branch
      %17 = sbr.rel (%p15) target = $region8
    $region5: #{tpu_custom_call.1} parent=1 // loop_body
      %s19 = ssub.s32 %s14, 1
      %s20 = ssub.s32 %s14, 2
      %s27 = sadd.s32 1, %s22
      %p28 = scmp.ge.s32.totalorder %s27, 1
      %s29 = scalar_select %p28, 0, %s27
      %s30 = sadd.s32 1, %s21
      %s31 = scalar_select %p28, %s30, %s21
      %p32 = scmp.ge.s32.totalorder %s31, 2
      %s33 = scalar_select %p32, 0, %s31
      %s34 = ssub.s32 %s21, %s33
      %s35 = ssub.s32 %s22, %s29
      %s36 = sor.u32 %s34, %s35
      %p37 = scmp.eq.s32.totalorder %s36, 0
      %s39 = sadd.s32 %s38, 1
      %s40 = scalar_select %p37, %s38, %s39
      %p43 = pneg %p37
      %p44 = scmp.eq.s32.totalorder %s14, 1
      %p45 = por %p43, %p44
      %p46 = scmp.ne.s32.totalorder %s38, %s41
      %p47 = scmp.eq.s32.totalorder %s14, 0
      %p48 = por %p46, %p47
      %p49 = scmp.ne.s32.totalorder %s38, %s41
      %p50 = scmp.eq.s32.totalorder %s19, 1
      %p51 = por %p49, %p50
      %p52 = scmp.ne.s32.totalorder %s41, %s42
      %p53 = scmp.eq.s32.totalorder %s19, 0
      %p54 = por %p52, %p53
      %p55 = scmp.ne.s32.totalorder %s41, %s42
      %p56 = scmp.eq.s32.totalorder %s20, 1
      %p57 = por %p55, %p56
      %p59 = scmp.ne.s32.totalorder %s42, %s58
      %p60 = scmp.eq.s32.totalorder %s20, 0
      %p61 = por %p59, %p60
      %s63 = sadd.s32 %s62, 1
      %p66 = scmp.eq.s32.totalorder %s14, 1
      %p67 = scmp.ne.s32.totalorder %s62, %s64
      %p68 = scmp.eq.s32.totalorder %s14, 0
      %p69 = por %p67, %p68
      %p70 = scmp.ne.s32.totalorder %s62, %s64
      %p71 = scmp.eq.s32.totalorder %s19, 1
      %p72 = por %p70, %p71
      %p73 = scmp.ne.s32.totalorder %s64, %s65
      %p74 = scmp.eq.s32.totalorder %s19, 0
      %p75 = por %p73, %p74
      %p76 = scmp.ne.s32.totalorder %s64, %s65
      %p77 = scmp.eq.s32.totalorder %s20, 1
      %p78 = por %p76, %p77
      %p80 = scmp.ne.s32.totalorder %s65, %s79
      %p81 = scmp.eq.s32.totalorder %s20, 0
      %p82 = por %p80, %p81
      %s84 = sadd.s32 %s83, 1
      %p87 = scmp.eq.s32.totalorder %s14, 1
      %p88 = scmp.ne.s32.totalorder %s83, %s85
      %p89 = scmp.eq.s32.totalorder %s14, 0
      %p90 = por %p88, %p89
      %p91 = scmp.ne.s32.totalorder %s83, %s85
      %p92 = scmp.eq.s32.totalorder %s19, 1
      %p93 = por %p91, %p92
      %p94 = scmp.ne.s32.totalorder %s85, %s86
      %p95 = scmp.eq.s32.totalorder %s19, 0
      %p96 = por %p94, %p95
      %p97 = scmp.ne.s32.totalorder %s85, %s86
      %p98 = scmp.eq.s32.totalorder %s20, 1
      %p99 = por %p97, %p98
      %p101 = scmp.ne.s32.totalorder %s86, %s100
      %p102 = scmp.eq.s32.totalorder %s20, 0
      %p103 = por %p101, %p102
      %s105 = sadd.s32 %s104, 1
      %p108 = scmp.eq.s32.totalorder %s14, 1
      %p109 = scmp.ne.s32.totalorder %s104, %s106
      %p110 = scmp.eq.s32.totalorder %s14, 0
      %p111 = por %p109, %p110
      %p112 = scmp.ne.s32.totalorder %s104, %s106
      %p113 = scmp.eq.s32.totalorder %s19, 1
      %p114 = por %p112, %p113
      %p115 = scmp.ne.s32.totalorder %s106, %s107
      %p116 = scmp.eq.s32.totalorder %s19, 0
      %p117 = por %p115, %p116
      %p118 = scmp.ne.s32.totalorder %s106, %s107
      %p119 = scmp.eq.s32.totalorder %s20, 1
      %p120 = por %p118, %p119
      %p122 = scmp.ne.s32.totalorder %s107, %s121
      %p123 = scmp.eq.s32.totalorder %s20, 0
      %p124 = por %p122, %p123
      %s125 = ssub.s32 %s21, %s33
      %s126 = ssub.s32 %s22, %s29
      %s127 = sor.u32 %s125, %s126
      %p128 = scmp.eq.s32.totalorder %s127, 0
      %s130 = sadd.s32 %s129, 1
      %s131 = scalar_select %p128, %s129, %s130
      %p134 = pneg %p128
      %p135 = scmp.eq.s32.totalorder %s14, 1
      %p136 = por %p134, %p135
      %p137 = scmp.ne.s32.totalorder %s129, %s132
      %p138 = scmp.eq.s32.totalorder %s14, 0
      %p139 = por %p137, %p138
      %p140 = scmp.ne.s32.totalorder %s129, %s132
      %p141 = scmp.eq.s32.totalorder %s19, 1
      %p142 = por %p140, %p141
      %p143 = scmp.ne.s32.totalorder %s132, %s133
      %p144 = scmp.eq.s32.totalorder %s19, 0
      %p145 = por %p143, %p144
      %p146 = scmp.ne.s32.totalorder %s132, %s133
      %p147 = scmp.eq.s32.totalorder %s20, 1
      %p148 = por %p146, %p147
      %p150 = scmp.ne.s32.totalorder %s133, %s149
      %p151 = scmp.eq.s32.totalorder %s20, 0
      %p152 = por %p150, %p151
      %s153 = ssub.s32 %s21, %s33
      %s154 = ssub.s32 %s22, %s29
      %s155 = sor.u32 %s153, %s154
      %p156 = scmp.eq.s32.totalorder %s155, 0
      %s158 = sadd.s32 %s157, 1
      %s159 = scalar_select %p156, %s157, %s158
      %p162 = pneg %p156
      %p163 = scmp.eq.s32.totalorder %s14, 1
      %p164 = por %p162, %p163
      %p165 = scmp.ne.s32.totalorder %s157, %s160
      %p166 = scmp.eq.s32.totalorder %s14, 0
      %p167 = por %p165, %p166
      %p168 = scmp.ne.s32.totalorder %s157, %s160
      %p169 = scmp.eq.s32.totalorder %s19, 1
      %p170 = por %p168, %p169
      %p171 = scmp.ne.s32.totalorder %s160, %s161
      %p172 = scmp.eq.s32.totalorder %s19, 0
      %p173 = por %p171, %p172
      %p174 = scmp.ne.s32.totalorder %s160, %s161
      %p175 = scmp.eq.s32.totalorder %s20, 1
      %p176 = por %p174, %p175
      %p178 = scmp.ne.s32.totalorder %s161, %s177
      %p179 = scmp.eq.s32.totalorder %s20, 0
      %p180 = por %p178, %p179
      %p181 = scmp.le.s32.totalorder 1, %s14
      %p182 = scmp.lt.s32.totalorder %s14, 3
      %p183 = pnand %p181, %p182
      %p184 = pneg %p183
      // Predicated region
      $region9: #{tpu_custom_call.1} parent=5 // pred_check
        _
      $region10: #{tpu_custom_call.1} parent=5 // pred_check_branch
        %186 = sbr.rel (%p183) target = $region12
      $region11: #{tpu_custom_call.1} parent=5 // pred_region
        %s187 = ssub.s32 %s14, 1
        // Predicated region
        $region13: #{tpu_custom_call.1} parent=11 // pred_check
          %p188 = pneg %p75
        $region14: #{tpu_custom_call.1} parent=11 // pred_check_branch
          %190 = sbr.rel (%p188) target = $region16
        $region15: #{tpu_custom_call.1} parent=11 // pred_region
          _
        $region16: #{tpu_custom_call.1} parent=11 // pred_fallthru
          _
        // Predicated region
        $region17: #{tpu_custom_call.1} parent=11 // pred_check
          %p191 = pneg %p96
        $region18: #{tpu_custom_call.1} parent=11 // pred_check_branch
          %193 = sbr.rel (%p191) target = $region20
        $region19: #{tpu_custom_call.1} parent=11 // pred_region
          _
        $region20: #{tpu_custom_call.1} parent=11 // pred_fallthru
          _
        // Predicated region
        $region21: #{tpu_custom_call.1} parent=11 // pred_check
          %p194 = pneg %p117
        $region22: #{tpu_custom_call.1} parent=11 // pred_check_branch
          %196 = sbr.rel (%p194) target = $region24
        $region23: #{tpu_custom_call.1} parent=11 // pred_region
          _
        $region24: #{tpu_custom_call.1} parent=11 // pred_fallthru
          _
      $region12: #{tpu_custom_call.1} parent=5 // pred_fallthru
        _
      %p197 = scmp.lt.s32.totalorder %s14, 2
      // Predicated region
      $region25: #{tpu_custom_call.1} parent=5 // pred_check
        %p198 = pneg %p197
      $region26: #{tpu_custom_call.1} parent=5 // pred_check_branch
        %200 = sbr.rel (%p198) target = $region28
      $region27: #{tpu_custom_call.1} parent=5 // pred_region
        // Predicated region
        $region29: #{tpu_custom_call.1} parent=27 // pred_check
          %p201 = pneg %p48
        $region30: #{tpu_custom_call.1} parent=27 // pred_check_branch
          %203 = sbr.rel (%p201) target = $region32
        $region31: #{tpu_custom_call.1} parent=27 // pred_region
          %p204 = scmp.lt.s32.totalorder %s21, 1
          %s205 = scalar_select %p204, %s21, 1
          %p206 = scmp.lt.s32.totalorder %s22, 0
          %s207 = scalar_select %p206, %s22, 0
          %s208 = smul.addr %s205, 5
          %s209 = sadd.s32 %s207, %s208
          %s210 = smul.addr %s209, 8
          %s211 = scalar_lea.vmem %s0, %s210
        $region32: #{tpu_custom_call.1} parent=27 // pred_fallthru
          _
        // Predicated region
        $region33: #{tpu_custom_call.1} parent=27 // pred_check
          %p212 = pneg %p139
        $region34: #{tpu_custom_call.1} parent=27 // pred_check_branch
          %214 = sbr.rel (%p212) target = $region36
        $region35: #{tpu_custom_call.1} parent=27 // pred_region
          %p215 = scmp.lt.s32.totalorder %s21, 1
          %s216 = scalar_select %p215, %s21, 1
          %p217 = scmp.lt.s32.totalorder %s22, 0
          %s218 = scalar_select %p217, %s22, 0
          %s219 = sadd.s32 %s218, %s216
          %s220 = smul.addr %s219, 8
          %s221 = scalar_lea.vmem %s4, %s220
        $region36: #{tpu_custom_call.1} parent=27 // pred_fallthru
          _
      $region28: #{tpu_custom_call.1} parent=5 // pred_fallthru
        _
      %p222 = scmp.le.s32.totalorder 1, %s14
      %p223 = scmp.lt.s32.totalorder %s14, 3
      %p224 = pnand %p222, %p223
      %p225 = pneg %p224
      // Predicated region
      $region37: #{tpu_custom_call.1} parent=5 // pred_check
        _
      $region38: #{tpu_custom_call.1} parent=5 // pred_check_branch
        %227 = sbr.rel (%p224) target = $region40
      $region39: #{tpu_custom_call.1} parent=5 // pred_region
        %s228 = ssub.s32 %s14, 1
        %p229 = scmp.lt.s32.totalorder %s23, 1
        %s230 = scalar_select %p229, %s23, 1
        %p231 = scmp.lt.s32.totalorder %s24, 0
        %s232 = scalar_select %p231, %s24, 0
        %s233 = smul.addr %s230, 5
        %s234 = sadd.s32 %s232, %s233
        %s235 = smul.addr %s234, 8
        %s236 = scalar_lea.vmem %s0, %s235
        %p237 = pneg %p54
        %p238 = pneg %p51
        %p239 = pneg %p75
        %p240 = pneg %p72
        %p241 = pneg %p96
        %p242 = pneg %p93
        %p243 = pneg %p117
        %p244 = pneg %p114
        %p245 = scmp.lt.s32.totalorder %s23, 1
        %s246 = scalar_select %p245, %s23, 1
        %p247 = scmp.lt.s32.totalorder %s24, 0
        %s248 = scalar_select %p247, %s24, 0
        %s249 = sadd.s32 %s248, %s246
        %s250 = smul.addr %s249, 8
        %s251 = scalar_lea.vmem %s4, %s250
        %p252 = pneg %p145
        %p253 = pneg %p142
        %p254 = pneg %p173
        %p255 = pneg %p170
        %s256 = sand.u32 %s160, 1
        %s257 = scalar_lea.sflag [#allocation3], %s256
        %s258 = sand.u32 %s160, 1
        %s259 = smul.addr %s258, 8
        %s260 = scalar_lea.vmem [#allocation2], %s259
        %p261 = scmp.lt.s32.totalorder %s23, 1
        %s262 = scalar_select %p261, %s23, 1
        %p263 = scmp.lt.s32.totalorder %s24, 0
        %s264 = scalar_select %p263, %s24, 0
        %s265 = smul.addr %s262, 5
        %s266 = sadd.s32 %s264, %s265
        %s267 = smul.addr %s266, 8
        %s268 = scalar_lea.vmem %s0, %s267
        %p269 = scmp.lt.s32.totalorder %s23, 1
        %s270 = scalar_select %p269, %s23, 1
        %p271 = scmp.lt.s32.totalorder %s24, 0
        %s272 = scalar_select %p271, %s24, 0
        %s273 = sadd.s32 %s272, %s270
        %s274 = smul.addr %s273, 8
        %s275 = scalar_lea.vmem %s4, %s274
        %v276 = vld [vmem:[%s1] sm:$0xff]
        %v277 = vld [vmem:[%s268] sm:$0xff]
        %v278 = vld [vmem:[%s268 + $0x8] sm:$0xff]
        %v279 = vld [vmem:[%s268 + $0x10] sm:$0xff]
        %v280 = vld [vmem:[%s268 + $0x18] sm:$0xff]
        %v281 = vld [vmem:[%s268 + $0x20] sm:$0xf]
        %v282 = vld [vmem:[%s2] sm:$0xff]
        %284 = vset.pattern.permute.xlu0 0
        %285 = vperm.xlu0 %284, %v282
        %v286 = vpop.permute.xlu0 %285
        %vm288 = vcmask 293888
        %v290 = vsel %vm288, %v276, 0
        %vm292 = vcmask 1043456
        %v294 = vsel %vm292, %v281, 0
        %296 = vmatprep.subr.mxu0 0.0
        %297 = vmatpush1.msra.mxu0 %v277
        %298 = vmatprep.subr.mxu0 0.0
        %299 = vmatpush1.msra.mxu0 %v278
        %300 = vmatprep.subr.mxu0 0.0
        %301 = vmatpush1.msra.mxu0 %v279
        %302 = vmatprep.subr.mxu0 0.0
        %303 = vmatpush1.msra.mxu0 %v280
        %304 = vmatprep.subr.mxu0 0.0
        %305 = vmatpush1.msra.mxu0 %v294
        %306 = vmatprep.subr.mxu0 0.0
        %307 = vmatpush1.msra.mxu0 0.0
        %308 = vmatprep.subr.mxu0 0.0
        %309 = vmatpush1.msra.mxu0 0.0
        %310 = vmatprep.subr.mxu0 0.0
        %311 = vmatpush1.msra.mxu0 0.0
        %312 = vmatprep.subr.mxu0 0.0
        %313 = vmatpush1.msra.mxu0 0.0
        %314 = vmatprep.subr.mxu0 0.0
        %315 = vmatpush1.msra.mxu0 0.0
        %316 = vmatprep.subr.mxu0 0.0
        %317 = vmatpush1.msra.mxu0 0.0
        %318 = vmatprep.subr.mxu0 0.0
        %319 = vmatpush1.msra.mxu0 0.0
        %320 = vmatprep.subr.mxu0 0.0
        %321 = vmatpush1.msra.mxu0 0.0
        %322 = vmatprep.subr.mxu0 0.0
        %323 = vmatpush1.msra.mxu0 0.0
        %324 = vmatprep.subr.mxu0 0.0
        %325 = vmatpush1.msra.mxu0 0.0
        %326 = vmatprep.subr.mxu0 0.0
        %327 = vmatpush1.msra.mxu0 0.0
        %328 = vmatprep.subr.mxu0 0.0
        %329 = vmatpush1.msra.mxu0 0.0
        %330 = vmatprep.subr.mxu0 0.0
        %331 = vmatpush1.msra.mxu0 0.0
        %332 = vmatprep.subr.mxu0 0.0
        %333 = vmatpush1.msra.mxu0 0.0
        %334 = vmatprep.subr.mxu0 0.0
        %335 = vmatpush1.msra.mxu0 0.0
        %336 = vmatprep.subr.mxu0 0.0
        %337 = vmatpush1.msra.mxu0 0.0
        %338 = vmatprep.subr.mxu0 0.0
        %339 = vmatpush1.msra.mxu0 0.0
        %340 = vmatprep.subr.mxu0 0.0
        %341 = vmatpush1.msra.mxu0 0.0
        %342 = vmatprep.subr.mxu0 0.0
        %343 = vmatpush1.msra.mxu0 0.0
        %344 = vmatprep.subr.mxu0 0.0
        %345 = vmatpush1.msra.mxu0 0.0
        %346 = vmatprep.subr.mxu0 0.0
        %347 = vmatpush1.msra.mxu0 0.0
        %348 = vmatprep.subr.mxu0 0.0
        %349 = vmatpush1.msra.mxu0 0.0
        %350 = vmatprep.subr.mxu0 0.0
        %351 = vmatpush1.msra.mxu0 0.0
        %352 = vmatprep.subr.mxu0 0.0
        %353 = vmatpush1.msra.mxu0 0.0
        %354 = vmatprep.subr.mxu0 0.0
        %355 = vmatpush1.msra.mxu0 0.0
        %356 = vmatprep.subr.mxu0 0.0
        %357 = vmatpush1.msra.mxu0 0.0
        %358 = vmatprep.subr.mxu0 0.0
        %359 = vmatpush1.msra.mxu0 0.0
        %360 = vmatprep.mubr.f32.mxu0 0.0
        %361 = vmatmul.mubr.f32.gmra.mrb[0].mxu0 %v290
        %v362 = vpop.f32.mrb[0].mxu0
        %v363 = vadd.f32 %v286, %v362
        %v364 = vpop.f32.mrb[0].mxu0
        %365 = vdwg.mxu0
        %v366 = vld [vmem:[%s275] sm:$0xff]
        %v367 = vadd.f32 %v363, %v366
        %v368 = vld [vmem:[%s3] sm:$0xff]
        %vm369 = vcmp.ge.f32.partialorder %v367, 0.0
        %371 = vset.pattern.permute.xlu0 0
        %372 = vperm.xlu0 %371, %v368
        %v373 = vpop.permute.xlu0 %372
        %v375 = vmul.f32 %v373, %v367
        %v376 = vsel %vm369, %v367, %v375
        %377 = vst [vmem:[%s260] sm:$0xff] %v376
        %s378 = sand.u32 %s160, 1
        %s379 = scalar_lea.sflag [#allocation3], %s378
        %s380 = sand.u32 %s160, 1
        %s381 = smul.addr %s380, 8
        %s382 = scalar_lea.vmem [#allocation2], %s381
        // Predicated region
        $region41: #{tpu_custom_call.1} parent=39 // pred_check
          %p383 = pneg %p170
        $region42: #{tpu_custom_call.1} parent=39 // pred_check_branch
          %385 = sbr.rel (%p383) target = $region44
        $region43: #{tpu_custom_call.1} parent=39 // pred_region
          %s387 = ssub.s32 128, 128
          %388 = vsyncadd %s379, %s387
          %s389 = sadd.s32 %s24, %s23
          %s390 = smul.addr %s389, 128
          %s391 = scalar_lea.hbm %s5, %s390
          %s393 = sshll.u32 %s382, 4
          %s394 = int_to_ptr.vmem [resolvable:$true] %s393
          %396 = dma.vmem_to_hbm [thread:$0]  %s394, 128, %s391, %s379
        $region44: #{tpu_custom_call.1} parent=39 // pred_fallthru
          _
      $region40: #{tpu_custom_call.1} parent=5 // pred_fallthru
        _
      %p397 = scmp.le.s32.totalorder 2, %s14
      // Predicated region
      $region45: #{tpu_custom_call.1} parent=5 // pred_check
        %p398 = pneg %p397
      $region46: #{tpu_custom_call.1} parent=5 // pred_check_branch
        %400 = sbr.rel (%p398) target = $region48
      $region47: #{tpu_custom_call.1} parent=5 // pred_region
        %s401 = ssub.s32 %s14, 2
        // Predicated region
        $region49: #{tpu_custom_call.1} parent=47 // pred_check
          %p402 = pneg %p176
        $region50: #{tpu_custom_call.1} parent=47 // pred_check_branch
          %404 = sbr.rel (%p402) target = $region52
        $region51: #{tpu_custom_call.1} parent=47 // pred_region
          %s405 = sand.u32 %s161, 1
          %s406 = scalar_lea.sflag [#allocation3], %s405
          %s407 = sand.u32 %s161, 1
          %s408 = smul.addr %s407, 8
          %s409 = scalar_lea.vmem [#allocation2], %s408
          %410 = dma.done %s406, 128
        $region52: #{tpu_custom_call.1} parent=47 // pred_fallthru
          _
      $region48: #{tpu_custom_call.1} parent=5 // pred_fallthru
        _
    $region6: #{tpu_custom_call.1} parent=1 // loop_footer
      %s18 = sadd.s32 1, %s14
    $region7: #{tpu_custom_call.1} parent=1 // loop_footer_branch
      %13 = sbr.rel target = $region3
    $region8: #{tpu_custom_call.1} parent=1 // loop_exit
      _
    %411 = vsyncpa [#allocation3], 1
    %s412 = scalar_lea.sflag [#allocation3], 1
    %413 = vsyncpa %s412, 1

</llo_original>
